<compile_context>
chip_gen: v6e
topology: v6e:2x2x1
jax: 0.10.0
libtpu: 0.0.40
codegen_flags: <defaults>
</compile_context>

<pallas_src>
import jax
import jax.numpy as jnp
from jax import lax
from jax.experimental import pallas as pl
from jax.experimental.pallas import tpu as pltpu


# ----------------------------------------------------------------------------
# Fused kernel (factory closes over static sizes)
# ----------------------------------------------------------------------------
def _make_siamese_kernel(num_sent, tile_b, seq_len, vocab):
    """One fused kernel per batch tile:

    ids_ref  : [TILE_B, S, L] int32   token ids (all sentences of the tile)
    mask_ref : [TILE_B, S, L] int32   attention mask
    table_ref: [V, H]         bf16    embedding table (VMEM-resident)
    w_ref    : [H, H]         bf16    pooler dense weight (VMEM-resident)
    b_ref    : [1, H]         f32     pooler dense bias
    out_ref  : [S-1, TILE_B]  f32     row-wise cosine scores (lane-dense)
    """

    def kernel(ids_ref, mask_ref, table_ref, w_ref, b_ref, out_ref):
        counts_list, denom_list = [], []
        for s in range(num_sent):                         # static unroll (2 or 3)
            ids_s = ids_ref[:, s, :]                      # [T, L] int32
            mask_s = mask_ref[:, s, :].astype(jnp.float32)  # cast in-kernel
            tok_iota = lax.broadcasted_iota(
                jnp.int32, (tile_b, seq_len, vocab), 2)   # [T, L, V]
            eq = ids_s[:, :, None] == tok_iota            # [T, L, V] bool
            # Masked one-hot token counts: fuses gather + masked sum over L.
            counts_list.append(
                jnp.sum(jnp.where(eq, mask_s[:, :, None], 0.0), axis=1))  # [T, V]
            denom_list.append(
                jnp.maximum(jnp.sum(mask_s, axis=1, keepdims=True), 1.0))  # [T, 1]

        counts = jnp.concatenate(counts_list, axis=0)     # [S*T, V] (T mult of 8)
        denom = jnp.concatenate(denom_list, axis=0)       # [S*T, 1]

        # Masked-sum of token embeddings == counts @ table (single MXU matmul
        # for all sentences of the tile; bf16 operands, fp32 accumulation).
        summed = jnp.dot(counts.astype(jnp.bfloat16), table_ref[...],
                         preferred_element_type=jnp.float32)      # [S*T, H]
        mean = summed * pl.reciprocal(denom, approx=True)         # EUP vrcp
        pooled = jnp.tanh(
            jnp.dot(mean.astype(jnp.bfloat16), w_ref[...],
                    preferred_element_type=jnp.float32) + b_ref[...])  # [S*T, H]

        # Row-wise cosine (VPU mul + lane reduce + EUP rsqrt); premise norm
        # hoisted so eval does not recompute it for the second hypothesis.
        premise = pooled[:tile_b]
        p_nsq = jnp.sum(premise * premise, axis=-1, keepdims=True)
        eps2 = jnp.float32(1e-16)                         # (1e-8)^2 norm clamp
        rows = []
        for s in range(1, num_sent):
            hyp = pooled[s * tile_b:(s + 1) * tile_b]
            dotp = jnp.sum(premise * hyp, axis=-1, keepdims=True)
            nsq = p_nsq * jnp.sum(hyp * hyp, axis=-1, keepdims=True)
            rows.append(
                (dotp * lax.rsqrt(jnp.maximum(nsq, eps2))).reshape(1, tile_b))
        out_ref[...] = rows[0] if len(rows) == 1 else jnp.concatenate(rows, axis=0)

    return kernel


# ----------------------------------------------------------------------------
# Wrapper: batch-tiled, parallel grid, VMEM-resident weights
# ----------------------------------------------------------------------------
def _choose_tile_b(batch):
    # >=8 keeps all pooled-tensor sublane slices (8,128)-aligned; 128 makes the
    # score output lane-dense (unmasked vst) and feeds the MXU a full M once
    # the batch is big enough.
    # TODO(synk): on v7x (64 MiB VMEM) cap TILE_B so double-buffered id/mask
    # blocks stay under the scoped limit once the synthetic encoder is swapped
    # for a real (L>=128, H>=768) one; consider pipeline_mode=pl.Buffered(3)
    # on the id/mask specs for v5e.
    return 128 if batch >= 128 else 8


def run_siamese(input_ids, attention_mask, table, w, b, num_sent):
    batch, _, seq_len = input_ids.shape
    vocab, hidden = table.shape
    tile_b = _choose_tile_b(batch)
    b_pad = ((batch + tile_b - 1) // tile_b) * tile_b

    def pad(x):
        if b_pad == batch:
            return x
        return jnp.pad(x, ((0, b_pad - batch),) + ((0, 0),) * (x.ndim - 1))

    ids = pad(input_ids[:, :num_sent, :].astype(jnp.int32))
    mask = pad(attention_mask[:, :num_sent, :].astype(jnp.int32))
    n_scores = num_sent - 1

    out = pl.pallas_call(
        _make_siamese_kernel(num_sent, tile_b, seq_len, vocab),
        out_shape=jax.ShapeDtypeStruct((n_scores, b_pad), jnp.float32),
        grid_spec=pltpu.PrefetchScalarGridSpec(
            num_scalar_prefetch=0,
            grid=(b_pad // tile_b,),
            in_specs=[
                pl.BlockSpec((tile_b, num_sent, seq_len), lambda i: (i, 0, 0)),
                pl.BlockSpec((tile_b, num_sent, seq_len), lambda i: (i, 0, 0)),
                pl.BlockSpec((vocab, hidden), lambda i: (0, 0)),   # VMEM-resident
                pl.BlockSpec((hidden, hidden), lambda i: (0, 0)),  # VMEM-resident
                pl.BlockSpec((1, hidden), lambda i: (0, 0)),
            ],
            out_specs=pl.BlockSpec((n_scores, tile_b), lambda i: (0, i)),
        ),
        compiler_params=pltpu.CompilerParams(
            dimension_semantics=("parallel",),        # megacore shard on v7x
            vmem_limit_bytes=32 * 1024 * 1024,
        ),
    )(ids, mask, table, w, b)
    return out[:, :batch]                              # (num_sent-1, B)


# ----------------------------------------------------------------------------
# Model (train / eval forward paths)
# ----------------------------------------------------------------------------
class SiameseReasoningPallas:
    def __init__(self, vocab_size=32, hidden_size=128, seed=0):
        self.hidden_size = hidden_size
        k = jax.random.PRNGKey(seed)
        k_emb, k_w, k_b = jax.random.split(k, 3)
        # Deterministic synthetic parameters (BERT-style pooler shapes).
        # Embedding & pooler weight in bf16: halves MXU-operand footprint and
        # the (tiny) HBM->VMEM weight DMA; fp32 accumulation kept in-kernel.
        self.embedding = (0.02 * jax.random.normal(
            k_emb, (vocab_size, hidden_size), jnp.float32)).astype(jnp.bfloat16)
        self.pooler_w = (0.02 * jax.random.normal(
            k_w, (hidden_size, hidden_size), jnp.float32)).astype(jnp.bfloat16)
        self.pooler_b = 0.02 * jax.random.normal(
            k_b, (1, hidden_size), jnp.float32)
        # TODO(synk): the real model loads a pretrained HF transformer encoder;
        # a synthetic embedding + masked-mean + tanh pooler stands in for it.
        # The in-kernel one-hot-counts gather only scales to small vocabularies;
        # a real vocab needs a DMA-gather of the selected embedding rows.

    def forward(self, input_ids, attention_mask, ask_for, mode="train"):
        # compose_causal_pair's ask_for swap dropped: diag(cos_sim) is symmetric
        # under swapping causes/effects, so the returned score is identical.
        del ask_for
        batch = input_ids.shape[0]
        if mode == "train":
            out = run_siamese(input_ids, attention_mask, self.embedding,
                              self.pooler_w, self.pooler_b, num_sent=2)
            return out[0].reshape(batch, 1)                       # [B, 1]
        elif mode == "eval":
            out = run_siamese(input_ids, attention_mask, self.embedding,
                              self.pooler_w, self.pooler_b, num_sent=3)
            return out[0].reshape(batch, 1), out[1].reshape(batch, 1)
        else:
            raise ValueError(f"unknown mode: {mode}")


# ----------------------------------------------------------------------------
# Main
# ----------------------------------------------------------------------------
if __name__ == "__main__":
    B, NUM_SENT, L = 4, 3, 8
    VOCAB, H = 32, 128

    key = jax.random.PRNGKey(0)
    k_ids, k_mask, k_ask = jax.random.split(key, 3)

    input_ids = jax.random.randint(k_ids, (B, NUM_SENT, L), 0, VOCAB, jnp.int32)
    # deterministic mask: at least first 4 tokens valid, rest random
    rand_mask = (jax.random.uniform(k_mask, (B, NUM_SENT, L)) > 0.3).astype(jnp.int32)
    pos = jnp.arange(L)[None, None, :]
    attention_mask = jnp.where(pos < 4, 1, rand_mask).astype(jnp.int32)
    ask_for = jax.random.randint(k_ask, (B,), 0, 2, jnp.int32)

    model = SiameseReasoningPallas(vocab_size=VOCAB, hidden_size=H, seed=0)

    # train forward: [B, 1] cosine scores
    train_scores = model.forward(input_ids, attention_mask, ask_for, mode="train")
    train_scores = jax.block_until_ready(train_scores)
    assert train_scores.shape == (B, 1), train_scores.shape
    assert bool(jnp.all(jnp.isfinite(train_scores)))
    assert bool(jnp.all(jnp.abs(train_scores) <= 1.0 + 1e-5))

    # eval forward: two [B, 1] score tensors
    s0, s1 = model.forward(input_ids, attention_mask, ask_for, mode="eval")
    s0, s1 = jax.block_until_ready((s0, s1))
    assert s0.shape == (B, 1) and s1.shape == (B, 1)
    assert bool(jnp.all(jnp.isfinite(s0))) and bool(jnp.all(jnp.isfinite(s1)))
    assert bool(jnp.all(jnp.abs(s0) <= 1.0 + 1e-5))
    assert bool(jnp.all(jnp.abs(s1) <= 1.0 + 1e-5))

    print("KERNEL_OK")
</pallas_src>

<mosaic_0001>
module attributes {stable_mosaic.version = 11 : i64} {
  func.func @kernel(%arg0: i32, %arg1: memref<8x2x8xi32, #tpu.memory_space<vmem>>, %arg2: memref<8x2x8xi32, #tpu.memory_space<vmem>>, %arg3: memref<32x128xbf16, #tpu.memory_space<vmem>>, %arg4: memref<128x128xbf16, #tpu.memory_space<vmem>>, %arg5: memref<1x128xf32, #tpu.memory_space<vmem>>, %arg6: memref<1x8xf32, #tpu.memory_space<vmem>>) attributes {dimension_semantics = [#tpu.dimension_semantics<parallel>], iteration_bounds = array<i64: 1>, scalar_prefetch = 0 : i64, scratch_operands = 0 : i64, tpu.core_type = #tpu.core_type<tc>, window_params = [{transform_indices = @transform_0, window_bounds = array<i64: 8, 2, 8>}, {transform_indices = @transform_1, window_bounds = array<i64: 8, 2, 8>}, {pipeline_mode = #tpu.pipeline_mode<synchronous>, transform_indices = @transform_2, window_bounds = array<i64: 32, 128>}, {pipeline_mode = #tpu.pipeline_mode<synchronous>, transform_indices = @transform_3, window_bounds = array<i64: 128, 128>}, {pipeline_mode = #tpu.pipeline_mode<synchronous>, transform_indices = @transform_4, window_bounds = array<i64: 1, 128>}, {transform_indices = @transform_5, window_bounds = array<i64: 1, 8>}]} {
    %c0 = arith.constant 0 : index
    %c0_0 = arith.constant 0 : index
    %c0_1 = arith.constant 0 : index
    %0 = vector.load %arg1[%c0, %c0_0, %c0_1] : memref<8x2x8xi32, #tpu.memory_space<vmem>>, vector<8x1x8xi32>
    %1 = vector.shape_cast %0 : vector<8x1x8xi32> to vector<8x8xi32>
    %c0_2 = arith.constant 0 : index
    %c0_3 = arith.constant 0 : index
    %c0_4 = arith.constant 0 : index
    %2 = vector.load %arg2[%c0_2, %c0_3, %c0_4] : memref<8x2x8xi32, #tpu.memory_space<vmem>>, vector<8x1x8xi32>
    %3 = vector.shape_cast %2 : vector<8x1x8xi32> to vector<8x8xi32>
    %4 = arith.sitofp %3 : vector<8x8xi32> to vector<8x8xf32>
    %5 = tpu.iota {dimensions = array<i32: 2>} : vector<8x8x32xi32>
    %6 = vector.shape_cast %1 : vector<8x8xi32> to vector<8x8x1xi32>
    %7 = vector.broadcast %6 : vector<8x8x1xi32> to vector<8x8x32xi32>
    %8 = arith.cmpi eq, %7, %5 : vector<8x8x32xi32>
    %9 = vector.shape_cast %4 : vector<8x8xf32> to vector<8x8x1xf32>
    %cst = arith.constant 0.000000e+00 : f32
    %10 = vector.shape_cast %9 : vector<8x8x1xf32> to vector<8x8x1xf32>
    %11 = vector.broadcast %10 : vector<8x8x1xf32> to vector<8x8x32xf32>
    %12 = vector.broadcast %cst : f32 to vector<8x8x32xf32>
    %13 = arith.select %8, %11, %12 : vector<8x8x32xi1>, vector<8x8x32xf32>
    %cst_5 = arith.constant dense<0.000000e+00> : vector<8x32xf32>
    %14 = vector.multi_reduction <add>, %13, %cst_5 [1] : vector<8x8x32xf32> to vector<8x32xf32>
    %cst_6 = arith.constant dense<0.000000e+00> : vector<8xf32>
    %15 = vector.multi_reduction <add>, %4, %cst_6 [1] : vector<8x8xf32> to vector<8xf32>
    %16 = vector.shape_cast %15 : vector<8xf32> to vector<8x1xf32>
    %cst_7 = arith.constant 1.000000e+00 : f32
    %17 = vector.broadcast %cst_7 : f32 to vector<8x1xf32>
    %18 = arith.maximumf %16, %17 : vector<8x1xf32>
    %c0_8 = arith.constant 0 : index
    %c1 = arith.constant 1 : index
    %c0_9 = arith.constant 0 : index
    %19 = vector.load %arg1[%c0_8, %c1, %c0_9] : memref<8x2x8xi32, #tpu.memory_space<vmem>>, vector<8x1x8xi32>
    %20 = vector.shape_cast %19 : vector<8x1x8xi32> to vector<8x8xi32>
    %c0_10 = arith.constant 0 : index
    %c1_11 = arith.constant 1 : index
    %c0_12 = arith.constant 0 : index
    %21 = vector.load %arg2[%c0_10, %c1_11, %c0_12] : memref<8x2x8xi32, #tpu.memory_space<vmem>>, vector<8x1x8xi32>
    %22 = vector.shape_cast %21 : vector<8x1x8xi32> to vector<8x8xi32>
    %23 = arith.sitofp %22 : vector<8x8xi32> to vector<8x8xf32>
    %24 = tpu.iota {dimensions = array<i32: 2>} : vector<8x8x32xi32>
    %25 = vector.shape_cast %20 : vector<8x8xi32> to vector<8x8x1xi32>
    %26 = vector.broadcast %25 : vector<8x8x1xi32> to vector<8x8x32xi32>
    %27 = arith.cmpi eq, %26, %24 : vector<8x8x32xi32>
    %28 = vector.shape_cast %23 : vector<8x8xf32> to vector<8x8x1xf32>
    %cst_13 = arith.constant 0.000000e+00 : f32
    %29 = vector.shape_cast %28 : vector<8x8x1xf32> to vector<8x8x1xf32>
    %30 = vector.broadcast %29 : vector<8x8x1xf32> to vector<8x8x32xf32>
    %31 = vector.broadcast %cst_13 : f32 to vector<8x8x32xf32>
    %32 = arith.select %27, %30, %31 : vector<8x8x32xi1>, vector<8x8x32xf32>
    %cst_14 = arith.constant dense<0.000000e+00> : vector<8x32xf32>
    %33 = vector.multi_reduction <add>, %32, %cst_14 [1] : vector<8x8x32xf32> to vector<8x32xf32>
    %cst_15 = arith.constant dense<0.000000e+00> : vector<8xf32>
    %34 = vector.multi_reduction <add>, %23, %cst_15 [1] : vector<8x8xf32> to vector<8xf32>
    %35 = vector.shape_cast %34 : vector<8xf32> to vector<8x1xf32>
    %cst_16 = arith.constant 1.000000e+00 : f32
    %36 = vector.broadcast %cst_16 : f32 to vector<8x1xf32>
    %37 = arith.maximumf %35, %36 : vector<8x1xf32>
    %38 = tpu.concatenate %14, %33 in 0 : vector<8x32xf32>, vector<8x32xf32> -> vector<16x32xf32>
    %39 = tpu.concatenate %18, %37 in 0 : vector<8x1xf32>, vector<8x1xf32> -> vector<16x1xf32>
    %40 = arith.truncf %38 : vector<16x32xf32> to vector<16x32xbf16>
    %c0_17 = arith.constant 0 : index
    %c0_18 = arith.constant 0 : index
    %41 = vector.load %arg3[%c0_17, %c0_18] : memref<32x128xbf16, #tpu.memory_space<vmem>>, vector<32x128xbf16>
    %cst_19 = arith.constant dense<0.000000e+00> : vector<16x128xf32>
    %42 = tpu.matmul %40, %41, %cst_19 {dimension_numbers = #tpu.dot_dimension_numbers<[1], [0], [0], [1], [0, 0, 1, 1], [], []>} : vector<16x32xbf16>, vector<32x128xbf16>, vector<16x128xf32> -> vector<16x128xf32>
    %43 = tpu.reciprocal %39 {approx = true} : vector<16x1xf32> -> vector<16x1xf32>
    %44 = vector.broadcast %43 : vector<16x1xf32> to vector<16x128xf32>
    %45 = arith.mulf %42, %44 : vector<16x128xf32>
    %46 = arith.truncf %45 : vector<16x128xf32> to vector<16x128xbf16>
    %c0_20 = arith.constant 0 : index
    %c0_21 = arith.constant 0 : index
    %47 = vector.load %arg4[%c0_20, %c0_21] : memref<128x128xbf16, #tpu.memory_space<vmem>>, vector<128x128xbf16>
    %cst_22 = arith.constant dense<0.000000e+00> : vector<16x128xf32>
    %48 = tpu.matmul %46, %47, %cst_22 {dimension_numbers = #tpu.dot_dimension_numbers<[1], [0], [0], [1], [0, 0, 1, 1], [], []>} : vector<16x128xbf16>, vector<128x128xbf16>, vector<16x128xf32> -> vector<16x128xf32>
    %c0_23 = arith.constant 0 : index
    %c0_24 = arith.constant 0 : index
    %49 = vector.load %arg5[%c0_23, %c0_24] : memref<1x128xf32, #tpu.memory_space<vmem>>, vector<1x128xf32>
    %50 = vector.broadcast %49 : vector<1x128xf32> to vector<16x128xf32>
    %51 = arith.addf %48, %50 : vector<16x128xf32>
    %52 = math.tanh %51 : vector<16x128xf32>
    %53 = vector.extract_strided_slice %52 {offsets = [0, 0], sizes = [8, 128], strides = [1, 1]} : vector<16x128xf32> to vector<8x128xf32>
    %54 = arith.mulf %53, %53 : vector<8x128xf32>
    %cst_25 = arith.constant dense<0.000000e+00> : vector<8xf32>
    %55 = vector.multi_reduction <add>, %54, %cst_25 [1] : vector<8x128xf32> to vector<8xf32>
    %56 = vector.shape_cast %55 : vector<8xf32> to vector<8x1xf32>
    %57 = vector.extract_strided_slice %52 {offsets = [8, 0], sizes = [8, 128], strides = [1, 1]} : vector<16x128xf32> to vector<8x128xf32>
    %58 = arith.mulf %53, %57 : vector<8x128xf32>
    %cst_26 = arith.constant dense<0.000000e+00> : vector<8xf32>
    %59 = vector.multi_reduction <add>, %58, %cst_26 [1] : vector<8x128xf32> to vector<8xf32>
    %60 = vector.shape_cast %59 : vector<8xf32> to vector<8x1xf32>
    %61 = arith.mulf %57, %57 : vector<8x128xf32>
    %cst_27 = arith.constant dense<0.000000e+00> : vector<8xf32>
    %62 = vector.multi_reduction <add>, %61, %cst_27 [1] : vector<8x128xf32> to vector<8xf32>
    %63 = vector.shape_cast %62 : vector<8xf32> to vector<8x1xf32>
    %64 = arith.mulf %56, %63 : vector<8x1xf32>
    %cst_28 = arith.constant 1.000000e-16 : f32
    %65 = vector.broadcast %cst_28 : f32 to vector<8x1xf32>
    %66 = arith.maximumf %64, %65 : vector<8x1xf32>
    %67 = math.rsqrt %66 : vector<8x1xf32>
    %68 = arith.mulf %60, %67 : vector<8x1xf32>
    %69 = vector.shape_cast %68 : vector<8x1xf32> to vector<1x8xf32>
    %c0_29 = arith.constant 0 : index
    %c0_30 = arith.constant 0 : index
    %70 = vector.load %arg6[%c0_29, %c0_30] : memref<1x8xf32, #tpu.memory_space<vmem>>, vector<1x8xf32>
    tpu.vector_store %arg6[%c0_29, %c0_30], %69 {strides = array<i32>} : memref<1x8xf32, #tpu.memory_space<vmem>>, vector<1x8xf32>,
    return
  }
  func.func @transform_0(%arg0: i32) -> (i32, i32, i32) {
    %c0_i32 = arith.constant 0 : i32
    %c0_i32_0 = arith.constant 0 : i32
    %c0_i32_1 = arith.constant 0 : i32
    return %arg0, %c0_i32, %c0_i32_0 : i32, i32, i32
  }
  func.func @transform_1(%arg0: i32) -> (i32, i32, i32) {
    %c0_i32 = arith.constant 0 : i32
    %c0_i32_0 = arith.constant 0 : i32
    %c0_i32_1 = arith.constant 0 : i32
    return %arg0, %c0_i32, %c0_i32_0 : i32, i32, i32
  }
  func.func @transform_2(%arg0: i32) -> (i32, i32) {
    %c0_i32 = arith.constant 0 : i32
    %c0_i32_0 = arith.constant 0 : i32
    %c0_i32_1 = arith.constant 0 : i32
    return %c0_i32, %c0_i32_0 : i32, i32
  }
  func.func @transform_3(%arg0: i32) -> (i32, i32) {
    %c0_i32 = arith.constant 0 : i32
    %c0_i32_0 = arith.constant 0 : i32
    %c0_i32_1 = arith.constant 0 : i32
    return %c0_i32, %c0_i32_0 : i32, i32
  }
  func.func @transform_4(%arg0: i32) -> (i32, i32) {
    %c0_i32 = arith.constant 0 : i32
    %c0_i32_0 = arith.constant 0 : i32
    %c0_i32_1 = arith.constant 0 : i32
    return %c0_i32, %c0_i32_0 : i32, i32
  }
  func.func @transform_5(%arg0: i32) -> (i32, i32) {
    %c0_i32 = arith.constant 0 : i32
    %c0_i32_0 = arith.constant 0 : i32
    return %c0_i32, %arg0 : i32, i32
  }
}

</mosaic_0001>

<llo_original>
// kernel: tpu_custom_call.1
$region0: #{tpu_custom_call.1}
  #allocation0 [shape = 'u32[]', space=smem, size = 0x4, offset = 0x4, fixed_abs, tag = 'smem constant byte address 0x4 - core index']
  #allocation1 [shape = 'u32[144,128]{1,0:T(1,128)}', space=vmem, size = 0x12000, scoped, tag = 'internal scratch']
  %s0 = inlined_call_operand.hbm [shape: s32[8,2,8], index: 0, kind: input, shape index: {}]
  %s1 = inlined_call_operand.hbm [shape: s32[8,2,8], index: 1, kind: input, shape index: {}]
  %s2 = inlined_call_operand.hbm [shape: bf16[32,128], index: 2, kind: input, shape index: {}]
  %s3 = inlined_call_operand.hbm [shape: bf16[128,128], index: 3, kind: input, shape index: {}]
  %s4 = inlined_call_operand.vmem [shape: f32[1,128], index: 4, kind: input, shape index: {}]
  %s5 = inlined_call_operand.hbm [shape: f32[1,8], index: 5, kind: output, shape index: {}]
  %s6 = sld [smem:[#allocation0]]
  $region46: #{tpu_custom_call.1} parent=0
    _
  %s8 = ssub.s32 1, %s6
  %s9 = scalar_select 0, %s8, %s6
  $region1: #{tpu_custom_call.1} parent=0
    #allocation2 [shape = 'u8[8192]{0}', space=vmem, size = 0x2000, scoped, tag = 'input window, operand 0, single buffered']
    #allocation3 [shape = 's32[1]{0}', space=sflag, size = 0x4, scoped, tag = 'scoped memory for tpu_custom_call.1']
    #allocation4 [shape = 's32[1]{0}', space=sflag, size = 0x4, scoped, tag = 'scoped memory for tpu_custom_call.1']
    #allocation5 [shape = 'u8[8192]{0}', space=vmem, size = 0x2000, scoped, tag = 'input window, operand 1, single buffered']
    #allocation6 [shape = 's32[1]{0}', space=sflag, size = 0x4, scoped, tag = 'scoped memory for tpu_custom_call.1']
    #allocation7 [shape = 'u8[8192]{0}', space=vmem, size = 0x2000, scoped, tag = 'input window, operand 2, single buffered']
    #allocation8 [shape = 'u8[32768]{0}', space=vmem, size = 0x8000, scoped, tag = 'input window, operand 3, single buffered']
    #allocation9 [shape = 's32[1]{0}', space=sflag, size = 0x4, scoped, tag = 'scoped memory for tpu_custom_call.1']
    #allocation10 [shape = 'u8[512]{0}', space=vmem, size = 0x400, scoped, tag = 'output window, operand 0, single buffered']
    %10 = vsyncpa [#allocation3], 0
    %11 = vsyncpa [#allocation6], 0
    %12 = vsyncpa [#allocation9], 0
    %13 = vsyncpa [#allocation4], 0
    // Predicated region
    $region2: #{tpu_custom_call.1} parent=1 // pred_check
      _
    $region3: #{tpu_custom_call.1} parent=1 // pred_check_branch
      %15 = sbr.rel (0) target = $region5
    $region4: #{tpu_custom_call.1} parent=1 // pred_region
      %s17 = ssub.s32 256, 256
      %18 = vsyncadd [#allocation3], %s17
      %s19 = sshll.u32 [#allocation2], 4
      %s20 = int_to_ptr.vmem [resolvable:$true] %s19
      %25 = dma.hbm_to_vmem [thread:$0]  %s0, 256, %s20, [#allocation3], 32, 32, 2
    $region5: #{tpu_custom_call.1} parent=1 // pred_fallthru
      _
    // Predicated region
    $region6: #{tpu_custom_call.1} parent=1 // pred_check
      _
    $region7: #{tpu_custom_call.1} parent=1 // pred_check_branch
      %27 = sbr.rel (0) target = $region9
    $region8: #{tpu_custom_call.1} parent=1 // pred_region
      %s29 = ssub.s32 256, 256
      %30 = vsyncadd [#allocation6], %s29
      %s31 = sshll.u32 [#allocation5], 4
      %s32 = int_to_ptr.vmem [resolvable:$true] %s31
      %37 = dma.hbm_to_vmem [thread:$0]  %s1, 256, %s32, [#allocation6], 32, 32, 2
    $region9: #{tpu_custom_call.1} parent=1 // pred_fallthru
      _
    // Predicated region
    $region10: #{tpu_custom_call.1} parent=1 // pred_check
      _
    $region11: #{tpu_custom_call.1} parent=1 // pred_check_branch
      %39 = sbr.rel (0) target = $region13
    $region12: #{tpu_custom_call.1} parent=1 // pred_region
      %s41 = ssub.s32 256, 256
      %42 = vsyncadd [#allocation6], %s41
      %s43 = sshll.u32 [#allocation7], 4
      %s44 = int_to_ptr.vmem [resolvable:$true] %s43
      %49 = dma.hbm_to_vmem [thread:$0]  %s2, 256, %s44, [#allocation6], 64, 64, 4
    $region13: #{tpu_custom_call.1} parent=1 // pred_fallthru
      _
    // Predicated region
    $region14: #{tpu_custom_call.1} parent=1 // pred_check
      _
    $region15: #{tpu_custom_call.1} parent=1 // pred_check_branch
      %51 = sbr.rel (0) target = $region17
    $region16: #{tpu_custom_call.1} parent=1 // pred_region
      %s53 = ssub.s32 1024, 1024
      %54 = vsyncadd [#allocation9], %s53
      %s55 = sshll.u32 [#allocation8], 4
      %s56 = int_to_ptr.vmem [resolvable:$true] %s55
      %61 = dma.hbm_to_vmem [thread:$0]  %s3, 1024, %s56, [#allocation9], 64, 64, 4
    $region17: #{tpu_custom_call.1} parent=1 // pred_fallthru
      _
    // Predicated region
    $region18: #{tpu_custom_call.1} parent=1 // pred_check
      _
    $region19: #{tpu_custom_call.1} parent=1 // pred_check_branch
      %63 = sbr.rel (0) target = $region21
    $region20: #{tpu_custom_call.1} parent=1 // pred_region
      _
    $region21: #{tpu_custom_call.1} parent=1 // pred_fallthru
      _
    // Predicated region
    $region22: #{tpu_custom_call.1} parent=1 // pred_check
      _
    $region23: #{tpu_custom_call.1} parent=1 // pred_check_branch
      %65 = sbr.rel (0) target = $region25
    $region24: #{tpu_custom_call.1} parent=1 // pred_region
      %66 = dma.done [#allocation3], 256
    $region25: #{tpu_custom_call.1} parent=1 // pred_fallthru
      _
    // Predicated region
    $region26: #{tpu_custom_call.1} parent=1 // pred_check
      _
    $region27: #{tpu_custom_call.1} parent=1 // pred_check_branch
      %68 = sbr.rel (0) target = $region29
    $region28: #{tpu_custom_call.1} parent=1 // pred_region
      %69 = dma.done [#allocation6], 256
    $region29: #{tpu_custom_call.1} parent=1 // pred_fallthru
      _
    // Predicated region
    $region30: #{tpu_custom_call.1} parent=1 // pred_check
      _
    $region31: #{tpu_custom_call.1} parent=1 // pred_check_branch
      %71 = sbr.rel (0) target = $region33
    $region32: #{tpu_custom_call.1} parent=1 // pred_region
      %72 = dma.done [#allocation6], 256
    $region33: #{tpu_custom_call.1} parent=1 // pred_fallthru
      _
    // Predicated region
    $region34: #{tpu_custom_call.1} parent=1 // pred_check
      _
    $region35: #{tpu_custom_call.1} parent=1 // pred_check_branch
      %74 = sbr.rel (0) target = $region37
    $region36: #{tpu_custom_call.1} parent=1 // pred_region
      %75 = dma.done [#allocation9], 1024
    $region37: #{tpu_custom_call.1} parent=1 // pred_fallthru
      _
    %v77 = vld [vmem:[#allocation2] sm:$0x1]
    %v78 = vld [vmem:[#allocation2 + $0x2] sm:$0x1]
    %v79 = vld [vmem:[#allocation2 + $0x4] sm:$0x1]
    %v80 = vld [vmem:[#allocation2 + $0x6] sm:$0x1]
    %v81 = vld [vmem:[#allocation2 + $0x8] sm:$0x1]
    %v82 = vld [vmem:[#allocation2 + $0xa] sm:$0x1]
    %v83 = vld [vmem:[#allocation2 + $0xc] sm:$0x1]
    %v84 = vld [vmem:[#allocation2 + $0xe] sm:$0x1]
    %v85 = vld [vmem:[#allocation5] sm:$0x1]
    %v86 = vld [vmem:[#allocation5 + $0x2] sm:$0x1]
    %v87 = vld [vmem:[#allocation5 + $0x4] sm:$0x1]
    %v88 = vld [vmem:[#allocation5 + $0x6] sm:$0x1]
    %v89 = vld [vmem:[#allocation5 + $0x8] sm:$0x1]
    %v90 = vld [vmem:[#allocation5 + $0xa] sm:$0x1]
    %v91 = vld [vmem:[#allocation5 + $0xc] sm:$0x1]
    %v92 = vld [vmem:[#allocation5 + $0xe] sm:$0x1]
    %v93 = vcvt.s32.f32 %v85
    %v94 = vcvt.s32.f32 %v86
    %v95 = vcvt.s32.f32 %v87
    %v96 = vcvt.s32.f32 %v88
    %v97 = vcvt.s32.f32 %v89
    %v98 = vcvt.s32.f32 %v90
    %v99 = vcvt.s32.f32 %v91
    %v100 = vcvt.s32.f32 %v92
    %v101 = vlaneseq
    %v102 = vand.u32 %v101, 127
    %v103 = vlaneseq
    %v104 = vshrl.u32 %v103, 7
    %v105 = vsub.s32 0, %v104
    %v106 = vrot.slane %v77, %v105
    %108 = vbcast.lane.b32.xlu0 %v106, 256
    %v109 = vpop.permute.xlu0 %108
    %v110 = vlaneseq
    %v111 = vshrl.u32 %v110, 7
    %v112 = vsub.s32 0, %v111
    %v113 = vrot.slane %v78, %v112
    %115 = vbcast.lane.b32.xlu0 %v113, 256
    %v116 = vpop.permute.xlu0 %115
    %v117 = vlaneseq
    %v118 = vshrl.u32 %v117, 7
    %v119 = vsub.s32 0, %v118
    %v120 = vrot.slane %v79, %v119
    %122 = vbcast.lane.b32.xlu0 %v120, 256
    %v123 = vpop.permute.xlu0 %122
    %v124 = vlaneseq
    %v125 = vshrl.u32 %v124, 7
    %v126 = vsub.s32 0, %v125
    %v127 = vrot.slane %v80, %v126
    %129 = vbcast.lane.b32.xlu0 %v127, 256
    %v130 = vpop.permute.xlu0 %129
    %v131 = vlaneseq
    %v132 = vshrl.u32 %v131, 7
    %v133 = vsub.s32 0, %v132
    %v134 = vrot.slane %v81, %v133
    %136 = vbcast.lane.b32.xlu0 %v134, 256
    %v137 = vpop.permute.xlu0 %136
    %v138 = vlaneseq
    %v139 = vshrl.u32 %v138, 7
    %v140 = vsub.s32 0, %v139
    %v141 = vrot.slane %v82, %v140
    %143 = vbcast.lane.b32.xlu0 %v141, 256
    %v144 = vpop.permute.xlu0 %143
    %v145 = vlaneseq
    %v146 = vshrl.u32 %v145, 7
    %v147 = vsub.s32 0, %v146
    %v148 = vrot.slane %v83, %v147
    %150 = vbcast.lane.b32.xlu0 %v148, 256
    %v151 = vpop.permute.xlu0 %150
    %v152 = vlaneseq
    %v153 = vshrl.u32 %v152, 7
    %v154 = vsub.s32 0, %v153
    %v155 = vrot.slane %v84, %v154
    %157 = vbcast.lane.b32.xlu0 %v155, 256
    %v158 = vpop.permute.xlu0 %157
    %vm159 = vcmp.eq.s32.totalorder %v109, %v102
    %vm160 = vcmp.eq.s32.totalorder %v116, %v102
    %vm161 = vcmp.eq.s32.totalorder %v123, %v102
    %vm162 = vcmp.eq.s32.totalorder %v130, %v102
    %vm163 = vcmp.eq.s32.totalorder %v137, %v102
    %vm164 = vcmp.eq.s32.totalorder %v144, %v102
    %vm165 = vcmp.eq.s32.totalorder %v151, %v102
    %vm166 = vcmp.eq.s32.totalorder %v158, %v102
    %v167 = vlaneseq
    %v168 = vshrl.u32 %v167, 7
    %v169 = vsub.s32 0, %v168
    %v170 = vrot.slane %v93, %v169
    %172 = vbcast.lane.b32.xlu0 %v170, 256
    %v173 = vpop.permute.xlu0 %172
    %v174 = vlaneseq
    %v175 = vshrl.u32 %v174, 7
    %v176 = vsub.s32 0, %v175
    %v177 = vrot.slane %v94, %v176
    %179 = vbcast.lane.b32.xlu0 %v177, 256
    %v180 = vpop.permute.xlu0 %179
    %v181 = vlaneseq
    %v182 = vshrl.u32 %v181, 7
    %v183 = vsub.s32 0, %v182
    %v184 = vrot.slane %v95, %v183
    %186 = vbcast.lane.b32.xlu0 %v184, 256
    %v187 = vpop.permute.xlu0 %186
    %v188 = vlaneseq
    %v189 = vshrl.u32 %v188, 7
    %v190 = vsub.s32 0, %v189
    %v191 = vrot.slane %v96, %v190
    %193 = vbcast.lane.b32.xlu0 %v191, 256
    %v194 = vpop.permute.xlu0 %193
    %v195 = vlaneseq
    %v196 = vshrl.u32 %v195, 7
    %v197 = vsub.s32 0, %v196
    %v198 = vrot.slane %v97, %v197
    %200 = vbcast.lane.b32.xlu0 %v198, 256
    %v201 = vpop.permute.xlu0 %200
    %v202 = vlaneseq
    %v203 = vshrl.u32 %v202, 7
    %v204 = vsub.s32 0, %v203
    %v205 = vrot.slane %v98, %v204
    %207 = vbcast.lane.b32.xlu0 %v205, 256
    %v208 = vpop.permute.xlu0 %207
    %v209 = vlaneseq
    %v210 = vshrl.u32 %v209, 7
    %v211 = vsub.s32 0, %v210
    %v212 = vrot.slane %v99, %v211
    %214 = vbcast.lane.b32.xlu0 %v212, 256
    %v215 = vpop.permute.xlu0 %214
    %v216 = vlaneseq
    %v217 = vshrl.u32 %v216, 7
    %v218 = vsub.s32 0, %v217
    %v219 = vrot.slane %v100, %v218
    %221 = vbcast.lane.b32.xlu0 %v219, 256
    %v222 = vpop.permute.xlu0 %221
    %v223 = vsel %vm159, %v173, 0.0
    %v224 = vsel %vm160, %v180, 0.0
    %v225 = vsel %vm161, %v187, 0.0
    %v226 = vsel %vm162, %v194, 0.0
    %v227 = vsel %vm163, %v201, 0.0
    %v228 = vsel %vm164, %v208, 0.0
    %v229 = vsel %vm165, %v215, 0.0
    %v230 = vsel %vm166, %v222, 0.0
    %vm231 = vcmask 261120
    %v232 = vsel %vm231, %v223, 0.0
    %v233 = vrot.slane %v232, 4
    %v234 = vadd.f32 %v232, %v233
    %v235 = vrot.slane %v234, 2
    %v236 = vadd.f32 %v234, %v235
    %v237 = vrot.slane %v236, 1
    %v238 = vadd.f32 %v236, %v237
    %v239 = vsel %vm231, %v224, 0.0
    %v240 = vrot.slane %v239, 4
    %v241 = vadd.f32 %v239, %v240
    %v242 = vrot.slane %v241, 2
    %v243 = vadd.f32 %v241, %v242
    %v244 = vrot.slane %v243, 1
    %v245 = vadd.f32 %v243, %v244
    %v246 = vsel %vm231, %v225, 0.0
    %v247 = vrot.slane %v246, 4
    %v248 = vadd.f32 %v246, %v247
    %v249 = vrot.slane %v248, 2
    %v250 = vadd.f32 %v248, %v249
    %v251 = vrot.slane %v250, 1
    %v252 = vadd.f32 %v250, %v251
    %v253 = vsel %vm231, %v226, 0.0
    %v254 = vrot.slane %v253, 4
    %v255 = vadd.f32 %v253, %v254
    %v256 = vrot.slane %v255, 2
    %v257 = vadd.f32 %v255, %v256
    %v258 = vrot.slane %v257, 1
    %v259 = vadd.f32 %v257, %v258
    %v260 = vsel %vm231, %v227, 0.0
    %v261 = vrot.slane %v260, 4
    %v262 = vadd.f32 %v260, %v261
    %v263 = vrot.slane %v262, 2
    %v264 = vadd.f32 %v262, %v263
    %v265 = vrot.slane %v264, 1
    %v266 = vadd.f32 %v264, %v265
    %v267 = vsel %vm231, %v228, 0.0
    %v268 = vrot.slane %v267, 4
    %v269 = vadd.f32 %v267, %v268
    %v270 = vrot.slane %v269, 2
    %v271 = vadd.f32 %v269, %v270
    %v272 = vrot.slane %v271, 1
    %v273 = vadd.f32 %v271, %v272
    %v274 = vsel %vm231, %v229, 0.0
    %v275 = vrot.slane %v274, 4
    %v276 = vadd.f32 %v274, %v275
    %v277 = vrot.slane %v276, 2
    %v278 = vadd.f32 %v276, %v277
    %v279 = vrot.slane %v278, 1
    %v280 = vadd.f32 %v278, %v279
    %v281 = vsel %vm231, %v230, 0.0
    %v282 = vrot.slane %v281, 4
    %v283 = vadd.f32 %v281, %v282
    %v284 = vrot.slane %v283, 2
    %v285 = vadd.f32 %v283, %v284
    %v286 = vrot.slane %v285, 1
    %v287 = vadd.f32 %v285, %v286
    %v296 = vrot.slane %v94, 7
    %vm297 = vcmask 1041409
    %v298 = vsel %vm297, %v296, %v93
    %v299 = vrot.slane %v95, 6
    %vm300 = vcmask 1042434
    %v301 = vsel %vm300, %v299, %v298
    %v302 = vrot.slane %v96, 5
    %vm303 = vcmask 1043459
    %v304 = vsel %vm303, %v302, %v301
    %v305 = vrot.slane %v97, 4
    %vm306 = vcmask 1044484
    %v307 = vsel %vm306, %v305, %v304
    %v308 = vrot.slane %v98, 3
    %vm309 = vcmask 1045509
    %v310 = vsel %vm309, %v308, %v307
    %v311 = vrot.slane %v99, 2
    %vm312 = vcmask 1046534
    %v313 = vsel %vm312, %v311, %v310
    %v314 = vrot.slane %v100, 1
    %vm315 = vcmask 1047559
    %v316 = vsel %vm315, %v314, %v313
    %vm318 = vcmask 64512
    %v319 = vsel %vm318, %v316, 0.0
    %320 = vadd.xlane.f32.xlu0 %v319
    %v321 = vpop.xlane.xlu0 %320
    %v322 = vmax.f32 %v321, 1.0
    %v323 = vld [vmem:[#allocation2 + $0x1] sm:$0x1]
    %v324 = vld [vmem:[#allocation2 + $0x3] sm:$0x1]
    %v325 = vld [vmem:[#allocation2 + $0x5] sm:$0x1]
    %v326 = vld [vmem:[#allocation2 + $0x7] sm:$0x1]
    %v327 = vld [vmem:[#allocation2 + $0x9] sm:$0x1]
    %v328 = vld [vmem:[#allocation2 + $0xb] sm:$0x1]
    %v329 = vld [vmem:[#allocation2 + $0xd] sm:$0x1]
    %v330 = vld [vmem:[#allocation2 + $0xf] sm:$0x1]
    %v331 = vld [vmem:[#allocation5 + $0x1] sm:$0x1]
    %v332 = vld [vmem:[#allocation5 + $0x3] sm:$0x1]
    %v333 = vld [vmem:[#allocation5 + $0x5] sm:$0x1]
    %v334 = vld [vmem:[#allocation5 + $0x7] sm:$0x1]
    %v335 = vld [vmem:[#allocation5 + $0x9] sm:$0x1]
    %v336 = vld [vmem:[#allocation5 + $0xb] sm:$0x1]
    %v337 = vld [vmem:[#allocation5 + $0xd] sm:$0x1]
    %v338 = vld [vmem:[#allocation5 + $0xf] sm:$0x1]
    %v339 = vcvt.s32.f32 %v331
    %v340 = vcvt.s32.f32 %v332
    %v341 = vcvt.s32.f32 %v333
    %v342 = vcvt.s32.f32 %v334
    %v343 = vcvt.s32.f32 %v335
    %v344 = vcvt.s32.f32 %v336
    %v345 = vcvt.s32.f32 %v337
    %v346 = vcvt.s32.f32 %v338
    %v347 = vlaneseq
    %v348 = vshrl.u32 %v347, 7
    %v349 = vsub.s32 0, %v348
    %v350 = vrot.slane %v323, %v349
    %352 = vbcast.lane.b32.xlu0 %v350, 256
    %v353 = vpop.permute.xlu0 %352
    %v354 = vlaneseq
    %v355 = vshrl.u32 %v354, 7
    %v356 = vsub.s32 0, %v355
    %v357 = vrot.slane %v324, %v356
    %359 = vbcast.lane.b32.xlu0 %v357, 256
    %v360 = vpop.permute.xlu0 %359
    %v361 = vlaneseq
    %v362 = vshrl.u32 %v361, 7
    %v363 = vsub.s32 0, %v362
    %v364 = vrot.slane %v325, %v363
    %366 = vbcast.lane.b32.xlu0 %v364, 256
    %v367 = vpop.permute.xlu0 %366
    %v368 = vlaneseq
    %v369 = vshrl.u32 %v368, 7
    %v370 = vsub.s32 0, %v369
    %v371 = vrot.slane %v326, %v370
    %373 = vbcast.lane.b32.xlu0 %v371, 256
    %v374 = vpop.permute.xlu0 %373
    %v375 = vlaneseq
    %v376 = vshrl.u32 %v375, 7
    %v377 = vsub.s32 0, %v376
    %v378 = vrot.slane %v327, %v377
    %380 = vbcast.lane.b32.xlu0 %v378, 256
    %v381 = vpop.permute.xlu0 %380
    %v382 = vlaneseq
    %v383 = vshrl.u32 %v382, 7
    %v384 = vsub.s32 0, %v383
    %v385 = vrot.slane %v328, %v384
    %387 = vbcast.lane.b32.xlu0 %v385, 256
    %v388 = vpop.permute.xlu0 %387
    %v389 = vlaneseq
    %v390 = vshrl.u32 %v389, 7
    %v391 = vsub.s32 0, %v390
    %v392 = vrot.slane %v329, %v391
    %394 = vbcast.lane.b32.xlu0 %v392, 256
    %v395 = vpop.permute.xlu0 %394
    %v396 = vlaneseq
    %v397 = vshrl.u32 %v396, 7
    %v398 = vsub.s32 0, %v397
    %v399 = vrot.slane %v330, %v398
    %401 = vbcast.lane.b32.xlu0 %v399, 256
    %v402 = vpop.permute.xlu0 %401
    %vm403 = vcmp.eq.s32.totalorder %v353, %v102
    %vm404 = vcmp.eq.s32.totalorder %v360, %v102
    %vm405 = vcmp.eq.s32.totalorder %v367, %v102
    %vm406 = vcmp.eq.s32.totalorder %v374, %v102
    %vm407 = vcmp.eq.s32.totalorder %v381, %v102
    %vm408 = vcmp.eq.s32.totalorder %v388, %v102
    %vm409 = vcmp.eq.s32.totalorder %v395, %v102
    %vm410 = vcmp.eq.s32.totalorder %v402, %v102
    %v411 = vlaneseq
    %v412 = vshrl.u32 %v411, 7
    %v413 = vsub.s32 0, %v412
    %v414 = vrot.slane %v339, %v413
    %416 = vbcast.lane.b32.xlu0 %v414, 256
    %v417 = vpop.permute.xlu0 %416
    %v418 = vlaneseq
    %v419 = vshrl.u32 %v418, 7
    %v420 = vsub.s32 0, %v419
    %v421 = vrot.slane %v340, %v420
    %423 = vbcast.lane.b32.xlu0 %v421, 256
    %v424 = vpop.permute.xlu0 %423
    %v425 = vlaneseq
    %v426 = vshrl.u32 %v425, 7
    %v427 = vsub.s32 0, %v426
    %v428 = vrot.slane %v341, %v427
    %430 = vbcast.lane.b32.xlu0 %v428, 256
    %v431 = vpop.permute.xlu0 %430
    %v432 = vlaneseq
    %v433 = vshrl.u32 %v432, 7
    %v434 = vsub.s32 0, %v433
    %v435 = vrot.slane %v342, %v434
    %437 = vbcast.lane.b32.xlu0 %v435, 256
    %v438 = vpop.permute.xlu0 %437
    %v439 = vlaneseq
    %v440 = vshrl.u32 %v439, 7
    %v441 = vsub.s32 0, %v440
    %v442 = vrot.slane %v343, %v441
    %444 = vbcast.lane.b32.xlu0 %v442, 256
    %v445 = vpop.permute.xlu0 %444
    %v446 = vlaneseq
    %v447 = vshrl.u32 %v446, 7
    %v448 = vsub.s32 0, %v447
    %v449 = vrot.slane %v344, %v448
    %451 = vbcast.lane.b32.xlu0 %v449, 256
    %v452 = vpop.permute.xlu0 %451
    %v453 = vlaneseq
    %v454 = vshrl.u32 %v453, 7
    %v455 = vsub.s32 0, %v454
    %v456 = vrot.slane %v345, %v455
    %458 = vbcast.lane.b32.xlu0 %v456, 256
    %v459 = vpop.permute.xlu0 %458
    %v460 = vlaneseq
    %v461 = vshrl.u32 %v460, 7
    %v462 = vsub.s32 0, %v461
    %v463 = vrot.slane %v346, %v462
    %465 = vbcast.lane.b32.xlu0 %v463, 256
    %v466 = vpop.permute.xlu0 %465
    %v467 = vsel %vm403, %v417, 0.0
    %v468 = vsel %vm404, %v424, 0.0
    %v469 = vsel %vm405, %v431, 0.0
    %v470 = vsel %vm406, %v438, 0.0
    %v471 = vsel %vm407, %v445, 0.0
    %v472 = vsel %vm408, %v452, 0.0
    %v473 = vsel %vm409, %v459, 0.0
    %v474 = vsel %vm410, %v466, 0.0
    %v475 = vsel %vm231, %v467, 0.0
    %v476 = vrot.slane %v475, 4
    %v477 = vadd.f32 %v475, %v476
    %v478 = vrot.slane %v477, 2
    %v479 = vadd.f32 %v477, %v478
    %v480 = vrot.slane %v479, 1
    %v481 = vadd.f32 %v479, %v480
    %v482 = vsel %vm231, %v468, 0.0
    %v483 = vrot.slane %v482, 4
    %v484 = vadd.f32 %v482, %v483
    %v485 = vrot.slane %v484, 2
    %v486 = vadd.f32 %v484, %v485
    %v487 = vrot.slane %v486, 1
    %v488 = vadd.f32 %v486, %v487
    %v489 = vsel %vm231, %v469, 0.0
    %v490 = vrot.slane %v489, 4
    %v491 = vadd.f32 %v489, %v490
    %v492 = vrot.slane %v491, 2
    %v493 = vadd.f32 %v491, %v492
    %v494 = vrot.slane %v493, 1
    %v495 = vadd.f32 %v493, %v494
    %v496 = vsel %vm231, %v470, 0.0
    %v497 = vrot.slane %v496, 4
    %v498 = vadd.f32 %v496, %v497
    %v499 = vrot.slane %v498, 2
    %v500 = vadd.f32 %v498, %v499
    %v501 = vrot.slane %v500, 1
    %v502 = vadd.f32 %v500, %v501
    %v503 = vsel %vm231, %v471, 0.0
    %v504 = vrot.slane %v503, 4
    %v505 = vadd.f32 %v503, %v504
    %v506 = vrot.slane %v505, 2
    %v507 = vadd.f32 %v505, %v506
    %v508 = vrot.slane %v507, 1
    %v509 = vadd.f32 %v507, %v508
    %v510 = vsel %vm231, %v472, 0.0
    %v511 = vrot.slane %v510, 4
    %v512 = vadd.f32 %v510, %v511
    %v513 = vrot.slane %v512, 2
    %v514 = vadd.f32 %v512, %v513
    %v515 = vrot.slane %v514, 1
    %v516 = vadd.f32 %v514, %v515
    %v517 = vsel %vm231, %v473, 0.0
    %v518 = vrot.slane %v517, 4
    %v519 = vadd.f32 %v517, %v518
    %v520 = vrot.slane %v519, 2
    %v521 = vadd.f32 %v519, %v520
    %v522 = vrot.slane %v521, 1
    %v523 = vadd.f32 %v521, %v522
    %v524 = vsel %vm231, %v474, 0.0
    %v525 = vrot.slane %v524, 4
    %v526 = vadd.f32 %v524, %v525
    %v527 = vrot.slane %v526, 2
    %v528 = vadd.f32 %v526, %v527
    %v529 = vrot.slane %v528, 1
    %v530 = vadd.f32 %v528, %v529
    %v539 = vrot.slane %v340, 7
    %v540 = vsel %vm297, %v539, %v339
    %v541 = vrot.slane %v341, 6
    %v542 = vsel %vm300, %v541, %v540
    %v543 = vrot.slane %v342, 5
    %v544 = vsel %vm303, %v543, %v542
    %v545 = vrot.slane %v343, 4
    %v546 = vsel %vm306, %v545, %v544
    %v547 = vrot.slane %v344, 3
    %v548 = vsel %vm309, %v547, %v546
    %v549 = vrot.slane %v345, 2
    %v550 = vsel %vm312, %v549, %v548
    %v551 = vrot.slane %v346, 1
    %v552 = vsel %vm315, %v551, %v550
    %v554 = vsel %vm318, %v552, 0.0
    %555 = vadd.xlane.f32.xlu0 %v554
    %v556 = vpop.xlane.xlu0 %555
    %v557 = vmax.f32 %v556, 1.0
    %v566 = vsel %vm297, %v245, %v238
    %v567 = vsel %vm300, %v252, %v566
    %v568 = vsel %vm303, %v259, %v567
    %v569 = vsel %vm306, %v266, %v568
    %v570 = vsel %vm309, %v273, %v569
    %v571 = vsel %vm312, %v280, %v570
    %v572 = vsel %vm315, %v287, %v571
    %v582 = vsel %vm297, %v488, %v481
    %v583 = vsel %vm300, %v495, %v582
    %v584 = vsel %vm303, %v502, %v583
    %v585 = vsel %vm306, %v509, %v584
    %v586 = vsel %vm309, %v516, %v585
    %v587 = vsel %vm312, %v523, %v586
    %v588 = vsel %vm315, %v530, %v587
    %v590 = vpack.c.bf16 %v588, %v572
    %v591 = vld [vmem:[#allocation7] sm:$0xf]
    %v592 = vld [vmem:[#allocation7 + $0x4] sm:$0xf]
    %v593 = vld [vmem:[#allocation7 + $0x8] sm:$0xf]
    %v594 = vld [vmem:[#allocation7 + $0xc] sm:$0xf]
    %v599 = vunpack.c.l.b16 %v591
    %v600 = vunpack.c.l.b16 %v592
    %v601 = vunpack.c.l.b16 %v593
    %v602 = vunpack.c.l.b16 %v594
    %v603 = vpack.c.b16 %v600, %v599
    %v604 = vpack.c.b16 %v602, %v601
    %v608 = vsel %vm231, %v590, 0
    %610 = vmatprep.subr.bf16.mxu0 0
    %611 = vmatpush1.bf16.msra.mxu0 0
    %612 = vmatprep.subr.bf16.mxu0 0
    %613 = vmatpush1.bf16.msra.mxu0 0
    %614 = vmatprep.subr.bf16.mxu0 0
    %615 = vmatpush1.bf16.msra.mxu0 0
    %616 = vmatprep.subr.bf16.mxu0 0
    %617 = vmatpush1.bf16.msra.mxu0 0
    %618 = vmatprep.subr.bf16.mxu0 0
    %619 = vmatpush1.bf16.msra.mxu0 0
    %620 = vmatprep.subr.bf16.mxu0 0
    %621 = vmatpush1.bf16.msra.mxu0 0
    %622 = vmatprep.subr.bf16.mxu0 0
    %623 = vmatpush1.bf16.msra.mxu0 %v604
    %624 = vmatprep.subr.bf16.mxu0 0
    %625 = vmatpush1.bf16.msra.mxu0 %v603
    %626 = vmatprep.subr.bf16.mxu0 0
    %627 = vmatpush2.bf16.msra.mxu0 0
    %628 = vmatprep.subr.bf16.mxu0 0
    %629 = vmatpush2.bf16.msra.mxu0 0
    %630 = vmatprep.subr.bf16.mxu0 0
    %631 = vmatpush2.bf16.msra.mxu0 0
    %632 = vmatprep.subr.bf16.mxu0 0
    %633 = vmatpush2.bf16.msra.mxu0 0
    %634 = vmatprep.subr.bf16.mxu0 0
    %635 = vmatpush2.bf16.msra.mxu0 0
    %636 = vmatprep.subr.bf16.mxu0 0
    %637 = vmatpush2.bf16.msra.mxu0 0
    %638 = vmatprep.subr.bf16.mxu0 0
    %639 = vmatpush2.bf16.msra.mxu0 0
    %640 = vmatprep.subr.bf16.mxu0 0
    %641 = vmatpush2.bf16.msra.mxu0 0
    %642 = vmatprep.mubr.bf16.mxu0 0
    %643 = vmatmul.mubr.bf16.gmra.mxu0 %v608
    %v644 = vpop.f32.mrf.mxu0
    %v645 = vadd.f32 0.0, %v644
    %v646 = vpop.f32.mrf.mxu0
    %v647 = vpop.f32.mrf.mxu0
    %v648 = vadd.f32 0.0, %v647
    %v649 = vpop.f32.mrf.mxu0
    %650 = vdwg.mxu0
    %v651 = vrcp.pop %v322
    %v652 = vrcp.pop %v557
    %654 = vset.pattern.permute.xlu0 0
    %655 = vperm.xlu0 %654, %v651
    %v656 = vpop.permute.xlu0 %655
    %659 = vset.pattern.permute.xlu0 0
    %660 = vperm.xlu0 %659, %v652
    %v661 = vpop.permute.xlu0 %660
    %v663 = vmul.f32 %v645, %v656
    %v664 = vmul.f32 %v648, %v661
    %v665 = vpack.c.bf16 %v664, %v663
    %v666 = vld [vmem:[#allocation8] sm:$0xf]
    %v667 = vld [vmem:[#allocation8 + $0x4] sm:$0xf]
    %v668 = vld [vmem:[#allocation8 + $0x8] sm:$0xf]
    %v669 = vld [vmem:[#allocation8 + $0xc] sm:$0xf]
    %v670 = vld [vmem:[#allocation8 + $0x10] sm:$0xf]
    %v671 = vld [vmem:[#allocation8 + $0x14] sm:$0xf]
    %v672 = vld [vmem:[#allocation8 + $0x18] sm:$0xf]
    %v673 = vld [vmem:[#allocation8 + $0x1c] sm:$0xf]
    %v674 = vld [vmem:[#allocation8 + $0x20] sm:$0xf]
    %v675 = vld [vmem:[#allocation8 + $0x24] sm:$0xf]
    %v676 = vld [vmem:[#allocation8 + $0x28] sm:$0xf]
    %v677 = vld [vmem:[#allocation8 + $0x2c] sm:$0xf]
    %v678 = vld [vmem:[#allocation8 + $0x30] sm:$0xf]
    %v679 = vld [vmem:[#allocation8 + $0x34] sm:$0xf]
    %v680 = vld [vmem:[#allocation8 + $0x38] sm:$0xf]
    %v681 = vld [vmem:[#allocation8 + $0x3c] sm:$0xf]
    %v682 = vld [vmem:[%s4] sm:$0x1]
    %v684 = vlaneseq
    %v685 = vshrl.u32 %v684, 7
    %v686 = vsub.s32 0, %v685
    %v687 = vrot.slane %v682, %v686
    %v705 = vunpack.c.l.b16 %v666
    %v706 = vunpack.c.l.b16 %v667
    %v707 = vunpack.c.l.b16 %v668
    %v708 = vunpack.c.l.b16 %v669
    %v709 = vunpack.c.l.b16 %v670
    %v710 = vunpack.c.l.b16 %v671
    %v711 = vunpack.c.l.b16 %v672
    %v712 = vunpack.c.l.b16 %v673
    %v713 = vunpack.c.l.b16 %v674
    %v714 = vunpack.c.l.b16 %v675
    %v715 = vunpack.c.l.b16 %v676
    %v716 = vunpack.c.l.b16 %v677
    %v717 = vunpack.c.l.b16 %v678
    %v718 = vunpack.c.l.b16 %v679
    %v719 = vunpack.c.l.b16 %v680
    %v720 = vunpack.c.l.b16 %v681
    %v721 = vpack.c.b16 %v706, %v705
    %v722 = vpack.c.b16 %v708, %v707
    %v723 = vpack.c.b16 %v710, %v709
    %v724 = vpack.c.b16 %v712, %v711
    %v725 = vpack.c.b16 %v714, %v713
    %v726 = vpack.c.b16 %v716, %v715
    %v727 = vpack.c.b16 %v718, %v717
    %v728 = vpack.c.b16 %v720, %v719
    %737 = vmatprep.subr.bf16.mxu0 0
    %738 = vmatpush1.bf16.msra.mxu0 %v728
    %739 = vmatprep.subr.bf16.mxu0 0
    %740 = vmatpush1.bf16.msra.mxu0 %v727
    %741 = vmatprep.subr.bf16.mxu0 0
    %742 = vmatpush1.bf16.msra.mxu0 %v726
    %743 = vmatprep.subr.bf16.mxu0 0
    %744 = vmatpush1.bf16.msra.mxu0 %v725
    %745 = vmatprep.subr.bf16.mxu0 0
    %746 = vmatpush1.bf16.msra.mxu0 %v724
    %747 = vmatprep.subr.bf16.mxu0 0
    %748 = vmatpush1.bf16.msra.mxu0 %v723
    %749 = vmatprep.subr.bf16.mxu0 0
    %750 = vmatpush1.bf16.msra.mxu0 %v722
    %751 = vmatprep.subr.bf16.mxu0 0
    %752 = vmatpush1.bf16.msra.mxu0 %v721
    %753 = vmatprep.subr.bf16.mxu0 0
    %754 = vmatpush2.bf16.msra.mxu0 0
    %755 = vmatprep.subr.bf16.mxu0 0
    %756 = vmatpush2.bf16.msra.mxu0 0
    %757 = vmatprep.subr.bf16.mxu0 0
    %758 = vmatpush2.bf16.msra.mxu0 0
    %759 = vmatprep.subr.bf16.mxu0 0
    %760 = vmatpush2.bf16.msra.mxu0 0
    %761 = vmatprep.subr.bf16.mxu0 0
    %762 = vmatpush2.bf16.msra.mxu0 0
    %763 = vmatprep.subr.bf16.mxu0 0
    %764 = vmatpush2.bf16.msra.mxu0 0
    %765 = vmatprep.subr.bf16.mxu0 0
    %766 = vmatpush2.bf16.msra.mxu0 0
    %767 = vmatprep.subr.bf16.mxu0 0
    %768 = vmatpush2.bf16.msra.mxu0 0
    %769 = vmatprep.mubr.bf16.mxu0 0
    %770 = vmatmul.mubr.bf16.gmra.mxu0 %v665
    %v771 = vpop.f32.mrf.mxu0
    %v772 = vadd.f32 %v687, %v771
    %v773 = vpop.f32.mrf.mxu0
    %v774 = vpop.f32.mrf.mxu0
    %v775 = vadd.f32 %v687, %v774
    %v776 = vpop.f32.mrf.mxu0
    %777 = vdwg.mxu0
    %v778 = vtanh.pop %v772
    %v779 = vtanh.pop %v775
    %v780 = vmul.f32 %v778, %v778
    %781 = vadd.xlane.f32.xlu0 %v780
    %v782 = vpop.xlane.xlu0 %781
    %v783 = vmul.f32 %v778, %v779
    %784 = vadd.xlane.f32.xlu0 %v783
    %v785 = vpop.xlane.xlu0 %784
    %v786 = vmul.f32 %v779, %v779
    %787 = vadd.xlane.f32.xlu0 %v786
    %v788 = vpop.xlane.xlu0 %787
    %v789 = vmul.f32 %v782, %v788
    %v790 = vmax.f32 %v789, 1e-16
    %v791 = vrsqrt.pop %v790
    %v792 = vmul.f32 %v785, %v791
    %v794 = vlaneseq
    %v795 = vshrl.u32 %v794, 7
    %v796 = vsub.s32 %v102, %v795
    %v797 = vrot.slane %v792, %v796
    %vm799 = vcmask 57344
    %800 = vst.msk [vmem:[#allocation10] sm:$0x1] %vm799, %v797
    // Predicated region
    $region38: #{tpu_custom_call.1} parent=1 // pred_check
      _
    $region39: #{tpu_custom_call.1} parent=1 // pred_check_branch
      %802 = sbr.rel (0) target = $region41
    $region40: #{tpu_custom_call.1} parent=1 // pred_region
      %s804 = ssub.s32 16, 16
      %805 = vsyncadd [#allocation4], %s804
      %s807 = sshll.u32 [#allocation10], 4
      %s808 = int_to_ptr.vmem [resolvable:$true] %s807
      %810 = dma.vmem_to_hbm [thread:$0]  %s808, 16, %s5, [#allocation4]
    $region41: #{tpu_custom_call.1} parent=1 // pred_fallthru
      _
    // Predicated region
    $region42: #{tpu_custom_call.1} parent=1 // pred_check
      _
    $region43: #{tpu_custom_call.1} parent=1 // pred_check_branch
      %812 = sbr.rel (0) target = $region45
    $region44: #{tpu_custom_call.1} parent=1 // pred_region
      %813 = dma.done [#allocation4], 16
    $region45: #{tpu_custom_call.1} parent=1 // pred_fallthru
      _
    %814 = vsyncpa [#allocation3], 1
    %815 = vsyncpa [#allocation6], 1
    %816 = vsyncpa [#allocation9], 1
    %817 = vsyncpa [#allocation4], 1

</llo_original>
